<compile_context>
chip_gen: v5e
topology: v5e:2x2
jax: 0.10.0
libtpu: 0.0.40
codegen_flags: <defaults>
</compile_context>

<pallas_src>
import functools

import jax
import jax.numpy as jnp
from jax.experimental import pallas as pl
from jax.experimental.pallas import tpu as pltpu


def _relu(x):
    return jnp.maximum(x, 0.0)


def _round_up(x, m):
    return (x + m - 1) // m * m


def attenuation_processor_kernel(
    # SMEM scalars
    att_scal_ref,        # (2,)  [att_mean, 1/att_std]
    resw_ref,            # (1,)  residual weight
    # VMEM tensors
    att_ref,             # (TB, N)
    meta_ref,            # (TB, M_IN)
    meta_mean_ref,       # (1, M_IN)
    meta_inv_std_ref,    # (1, M_IN)
    mw1_ref, mb1_ref,    # (M_IN, MF), (1, MF)
    mw2_ref, mb2_ref,    # (MF, MF),  (1, MF)
    iw_ref, ib_ref,      # (N, H),    (1, H)
    hwx_ref,             # (L, H, H)   x-part of hidden-layer weights
    metaw_ref,           # (MF, L*H + N) fused metadata weights (hidden + output)
    metab_ref,           # (1,  L*H + N) fused biases (hidden + output)
    owx_ref,             # (H, N)      x-part of output-layer weights
    out_ref,             # (TB, N)
    *, n_layers, hidden_size):
    H = hidden_size

    # Scalars read from SMEM (scalar path, no vector load + lane extract).
    att_mean = att_scal_ref[0]
    att_inv_std = att_scal_ref[1]
    res_w = resw_ref[0]

    # ---- InputNormalization (reciprocal precomputed in the wrapper) ----
    x_in = (att_ref[...] - att_mean) * att_inv_std
    m = (meta_ref[...] - meta_mean_ref[...]) * meta_inv_std_ref[...]

    # ---- metadata_processor: Linear->ReLU->Linear->ReLU (Dropout = identity) ----
    m = _relu(jnp.dot(m, mw1_ref[...], preferred_element_type=jnp.float32)
              + mb1_ref[...])
    m = _relu(jnp.dot(m, mw2_ref[...], preferred_element_type=jnp.float32)
              + mb2_ref[...])

    # ---- fused metadata contribution for all hidden layers + output layer:
    #      one wide MXU push instead of (n_layers + 1) narrow ones ----
    meta_all = (jnp.dot(m, metaw_ref[...], preferred_element_type=jnp.float32)
                + metab_ref[...])

    # ---- input layer: Linear->ReLU (Dropout = identity) ----
    x = _relu(jnp.dot(x_in, iw_ref[...], preferred_element_type=jnp.float32)
              + ib_ref[...])

    # ---- hidden layers: x = ReLU(x @ W_x[l] + meta_contrib[l]) ----
    for l in range(n_layers):
        x = _relu(jnp.dot(x, hwx_ref[l], preferred_element_type=jnp.float32)
                  + meta_all[:, l * H:(l + 1) * H])

    # ---- output layer + residual ----
    out = (jnp.dot(x, owx_ref[...], preferred_element_type=jnp.float32)
           + meta_all[:, n_layers * H:])
    out_ref[...] = x_in + res_w * out


def attenuation_processor(att, meta, params, *, n_layers, hidden_size,
                          batch_tile=256):
    B, N = att.shape
    _, M_IN = meta.shape
    H = hidden_size
    MF = params["mw1"].shape[1]
    L = n_layers

    # --- layout plumbing (done once, outside the kernel) ---
    hw, hb = params["hw"], params["hb"]          # (L, H+MF, H), (L, 1, H)
    ow, ob = params["ow"], params["ob"]          # (H+MF, N),   (1, N)
    hw_x = hw[:, :H, :]                                               # (L, H, H)
    hw_m = jnp.transpose(hw[:, H:, :], (1, 0, 2)).reshape(MF, L * H)  # (MF, L*H)
    hb_flat = hb.reshape(1, L * H)
    meta_w = jnp.concatenate([hw_m, ow[H:, :]], axis=1)               # (MF, L*H+N)
    meta_b = jnp.concatenate([hb_flat, ob], axis=1)                   # (1, L*H+N)
    ow_x = ow[:H, :]                                                  # (H, N)

    att_scal = jnp.stack([params["att_stats"][0, 0],
                          1.0 / params["att_stats"][0, 1]])           # (2,)
    resw = params["resw"].reshape(1)                                  # (1,)
    meta_inv_std = 1.0 / params["meta_std"]                           # (1, M_IN)

    # --- batch tiling: pad batch rows to a multiple of the tile ---
    TB = min(batch_tile, _round_up(B, 8))
    B_pad = _round_up(B, TB)
    if B_pad != B:
        att = jnp.pad(att, ((0, B_pad - B), (0, 0)))
        meta = jnp.pad(meta, ((0, B_pad - B), (0, 0)))
    grid = (B_pad // TB,)

    smem = pl.BlockSpec(memory_space=pltpu.MemorySpace.SMEM)
    row = lambda shape: pl.BlockSpec(shape, lambda i: (i, 0))
    const2 = lambda shape: pl.BlockSpec(shape, lambda i: (0, 0))
    const3 = lambda shape: pl.BlockSpec(shape, lambda i: (0, 0, 0))

    in_specs = [
        smem, smem,                                   # att_scal, resw
        row((TB, N)), row((TB, M_IN)),                # att, meta
        const2((1, M_IN)), const2((1, M_IN)),         # meta_mean, meta_inv_std
        const2((M_IN, MF)), const2((1, MF)),          # mw1, mb1
        const2((MF, MF)), const2((1, MF)),            # mw2, mb2
        const2((N, H)), const2((1, H)),               # iw, ib
        const3((L, H, H)),                            # hw_x
        const2((MF, L * H + N)), const2((1, L * H + N)),   # meta_w, meta_b
        const2((H, N)),                               # ow_x
    ]
    out_specs = row((TB, N))

    kernel = functools.partial(attenuation_processor_kernel,
                               n_layers=n_layers, hidden_size=hidden_size)
    out = pl.pallas_call(
        kernel,
        out_shape=jax.ShapeDtypeStruct((B_pad, N), jnp.float32),
        grid=grid,
        in_specs=in_specs,
        out_specs=out_specs,
        compiler_params=pltpu.CompilerParams(
            dimension_semantics=("parallel",)),
    )(att_scal, resw, att, meta,
      params["meta_mean"], meta_inv_std,
      params["mw1"], params["mb1"], params["mw2"], params["mb2"],
      params["iw"], params["ib"],
      hw_x, meta_w, meta_b, ow_x)
    return out[:B]


def make_params(key, *, n_samples, hidden_size, meta_in, meta_feat, n_layers):
    ks = jax.random.split(key, 12)
    s = 0.1
    p = {
        # normalization statistics (deterministic synthetic values)
        "att_stats": jnp.array([[0.5, 2.0]], dtype=jnp.float32),     # (1,2) mean,std
        "meta_mean": jnp.full((1, meta_in), 0.25, dtype=jnp.float32),
        "meta_std":  jnp.full((1, meta_in), 1.5, dtype=jnp.float32),
        # metadata processor
        "mw1": s * jax.random.normal(ks[0], (meta_in, meta_feat), jnp.float32),
        "mb1": s * jax.random.normal(ks[1], (1, meta_feat), jnp.float32),
        "mw2": s * jax.random.normal(ks[2], (meta_feat, meta_feat), jnp.float32),
        "mb2": s * jax.random.normal(ks[3], (1, meta_feat), jnp.float32),
        # input layer
        "iw": s * jax.random.normal(ks[4], (n_samples, hidden_size), jnp.float32),
        "ib": s * jax.random.normal(ks[5], (1, hidden_size), jnp.float32),
        # hidden layers (stacked)
        "hw": s * jax.random.normal(ks[6], (n_layers, hidden_size + meta_feat, hidden_size), jnp.float32),
        "hb": s * jax.random.normal(ks[7], (n_layers, 1, hidden_size), jnp.float32),
        # output layer
        "ow": s * jax.random.normal(ks[8], (hidden_size + meta_feat, n_samples), jnp.float32),
        "ob": s * jax.random.normal(ks[9], (1, n_samples), jnp.float32),
        # residual weight (init 0.1, as in the PyTorch module)
        "resw": jnp.array([[0.1]], dtype=jnp.float32),
    }
    return p


def reference_forward(att, meta, params, *, n_layers, hidden_size):
    """Pure-JAX reference mirroring the PyTorch forward (eval mode)."""
    x_in = (att - params["att_stats"][0, 0]) / params["att_stats"][0, 1]
    m = (meta - params["meta_mean"]) / params["meta_std"]
    m = jnp.maximum(m @ params["mw1"] + params["mb1"], 0.0)
    m = jnp.maximum(m @ params["mw2"] + params["mb2"], 0.0)
    x = jnp.maximum(x_in @ params["iw"] + params["ib"], 0.0)
    for l in range(n_layers):
        xm = jnp.concatenate([x, m], axis=-1)
        x = jnp.maximum(xm @ params["hw"][l] + params["hb"][l], 0.0)
    xm = jnp.concatenate([x, m], axis=-1)
    out = xm @ params["ow"] + params["ob"]
    return x_in + params["resw"][0, 0] * out


if __name__ == "__main__":
    B = 2
    N_SAMPLES = 16
    HIDDEN = 32
    META_IN = 2
    META_FEAT = 16
    N_LAYERS = 3

    key = jax.random.PRNGKey(0)
    k_att, k_meta, k_params = jax.random.split(key, 3)

    attenuation = jax.random.normal(k_att, (B, N_SAMPLES), jnp.float32)
    metadata = jax.random.normal(k_meta, (B, META_IN), jnp.float32)
    params = make_params(k_params, n_samples=N_SAMPLES, hidden_size=HIDDEN,
                         meta_in=META_IN, meta_feat=META_FEAT, n_layers=N_LAYERS)

    fwd = jax.jit(functools.partial(attenuation_processor,
                                    n_layers=N_LAYERS, hidden_size=HIDDEN))
    out = fwd(attenuation, metadata, params)
    out = jax.block_until_ready(out)

    ref = reference_forward(attenuation, metadata, params,
                            n_layers=N_LAYERS, hidden_size=HIDDEN)
    assert out.shape == (B, N_SAMPLES)
    assert jnp.allclose(out, ref, rtol=1e-5, atol=1e-5), "mismatch vs reference"

    print("KERNEL_OK")
</pallas_src>

<mosaic_0001>
module attributes {stable_mosaic.version = 11 : i64} {
  func.func @attenuation_processor_kernel(%arg0: i32, %arg1: memref<2xf32, #tpu.memory_space<smem>>, %arg2: memref<1xf32, #tpu.memory_space<smem>>, %arg3: memref<8x16xf32, #tpu.memory_space<vmem>>, %arg4: memref<8x2xf32, #tpu.memory_space<vmem>>, %arg5: memref<1x2xf32, #tpu.memory_space<vmem>>, %arg6: memref<1x2xf32, #tpu.memory_space<vmem>>, %arg7: memref<2x16xf32, #tpu.memory_space<vmem>>, %arg8: memref<1x16xf32, #tpu.memory_space<vmem>>, %arg9: memref<16x16xf32, #tpu.memory_space<vmem>>, %arg10: memref<1x16xf32, #tpu.memory_space<vmem>>, %arg11: memref<16x32xf32, #tpu.memory_space<vmem>>, %arg12: memref<1x32xf32, #tpu.memory_space<vmem>>, %arg13: memref<3x32x32xf32, #tpu.memory_space<vmem>>, %arg14: memref<16x112xf32, #tpu.memory_space<vmem>>, %arg15: memref<1x112xf32, #tpu.memory_space<vmem>>, %arg16: memref<32x16xf32, #tpu.memory_space<vmem>>, %arg17: memref<8x16xf32, #tpu.memory_space<vmem>>) attributes {dimension_semantics = [#tpu.dimension_semantics<parallel>], iteration_bounds = array<i64: 1>, scalar_prefetch = 0 : i64, scratch_operands = 0 : i64, tpu.core_type = #tpu.core_type<tc>, window_params = [{transform_indices = @transform_0, window_bounds = array<i64: 2>}, {transform_indices = @transform_1, window_bounds = array<i64: 1>}, {transform_indices = @transform_2, window_bounds = array<i64: 8, 16>}, {transform_indices = @transform_3, window_bounds = array<i64: 8, 2>}, {pipeline_mode = #tpu.pipeline_mode<synchronous>, transform_indices = @transform_4, window_bounds = array<i64: 1, 2>}, {pipeline_mode = #tpu.pipeline_mode<synchronous>, transform_indices = @transform_5, window_bounds = array<i64: 1, 2>}, {pipeline_mode = #tpu.pipeline_mode<synchronous>, transform_indices = @transform_6, window_bounds = array<i64: 2, 16>}, {pipeline_mode = #tpu.pipeline_mode<synchronous>, transform_indices = @transform_7, window_bounds = array<i64: 1, 16>}, {pipeline_mode = #tpu.pipeline_mode<synchronous>, transform_indices = @transform_8, window_bounds = array<i64: 16, 16>}, {pipeline_mode = #tpu.pipeline_mode<synchronous>, transform_indices = @transform_9, window_bounds = array<i64: 1, 16>}, {pipeline_mode = #tpu.pipeline_mode<synchronous>, transform_indices = @transform_10, window_bounds = array<i64: 16, 32>}, {pipeline_mode = #tpu.pipeline_mode<synchronous>, transform_indices = @transform_11, window_bounds = array<i64: 1, 32>}, {pipeline_mode = #tpu.pipeline_mode<synchronous>, transform_indices = @transform_12, window_bounds = array<i64: 3, 32, 32>}, {pipeline_mode = #tpu.pipeline_mode<synchronous>, transform_indices = @transform_13, window_bounds = array<i64: 16, 112>}, {pipeline_mode = #tpu.pipeline_mode<synchronous>, transform_indices = @transform_14, window_bounds = array<i64: 1, 112>}, {pipeline_mode = #tpu.pipeline_mode<synchronous>, transform_indices = @transform_15, window_bounds = array<i64: 32, 16>}, {transform_indices = @transform_16, window_bounds = array<i64: 8, 16>}]} {
    %c0 = arith.constant 0 : index
    %0 = memref.load %arg1[%c0] : memref<2xf32, #tpu.memory_space<smem>>
    %c1 = arith.constant 1 : index
    %1 = memref.load %arg1[%c1] : memref<2xf32, #tpu.memory_space<smem>>
    %c0_0 = arith.constant 0 : index
    %2 = memref.load %arg2[%c0_0] : memref<1xf32, #tpu.memory_space<smem>>
    %c0_1 = arith.constant 0 : index
    %c0_2 = arith.constant 0 : index
    %3 = vector.load %arg3[%c0_1, %c0_2] : memref<8x16xf32, #tpu.memory_space<vmem>>, vector<8x16xf32>
    %4 = vector.broadcast %0 : f32 to vector<8x16xf32>
    %5 = arith.subf %3, %4 : vector<8x16xf32>
    %6 = vector.broadcast %1 : f32 to vector<8x16xf32>
    %7 = arith.mulf %5, %6 : vector<8x16xf32>
    %c0_3 = arith.constant 0 : index
    %c0_4 = arith.constant 0 : index
    %8 = vector.load %arg4[%c0_3, %c0_4] : memref<8x2xf32, #tpu.memory_space<vmem>>, vector<8x2xf32>
    %c0_5 = arith.constant 0 : index
    %c0_6 = arith.constant 0 : index
    %9 = vector.load %arg5[%c0_5, %c0_6] : memref<1x2xf32, #tpu.memory_space<vmem>>, vector<1x2xf32>
    %10 = vector.broadcast %9 : vector<1x2xf32> to vector<8x2xf32>
    %11 = arith.subf %8, %10 : vector<8x2xf32>
    %c0_7 = arith.constant 0 : index
    %c0_8 = arith.constant 0 : index
    %12 = vector.load %arg6[%c0_7, %c0_8] : memref<1x2xf32, #tpu.memory_space<vmem>>, vector<1x2xf32>
    %13 = vector.broadcast %12 : vector<1x2xf32> to vector<8x2xf32>
    %14 = arith.mulf %11, %13 : vector<8x2xf32>
    %c0_9 = arith.constant 0 : index
    %c0_10 = arith.constant 0 : index
    %15 = vector.load %arg7[%c0_9, %c0_10] : memref<2x16xf32, #tpu.memory_space<vmem>>, vector<2x16xf32>
    %cst = arith.constant dense<0.000000e+00> : vector<8x16xf32>
    %16 = tpu.matmul %14, %15, %cst {dimension_numbers = #tpu.dot_dimension_numbers<[1], [0], [0], [1], [0, 0, 1, 1], [], []>} : vector<8x2xf32>, vector<2x16xf32>, vector<8x16xf32> -> vector<8x16xf32>
    %c0_11 = arith.constant 0 : index
    %c0_12 = arith.constant 0 : index
    %17 = vector.load %arg8[%c0_11, %c0_12] : memref<1x16xf32, #tpu.memory_space<vmem>>, vector<1x16xf32>
    %18 = vector.broadcast %17 : vector<1x16xf32> to vector<8x16xf32>
    %19 = arith.addf %16, %18 : vector<8x16xf32>
    %cst_13 = arith.constant 0.000000e+00 : f32
    %20 = vector.broadcast %cst_13 : f32 to vector<8x16xf32>
    %21 = arith.maximumf %19, %20 : vector<8x16xf32>
    %c0_14 = arith.constant 0 : index
    %c0_15 = arith.constant 0 : index
    %22 = vector.load %arg9[%c0_14, %c0_15] : memref<16x16xf32, #tpu.memory_space<vmem>>, vector<16x16xf32>
    %cst_16 = arith.constant dense<0.000000e+00> : vector<8x16xf32>
    %23 = tpu.matmul %21, %22, %cst_16 {dimension_numbers = #tpu.dot_dimension_numbers<[1], [0], [0], [1], [0, 0, 1, 1], [], []>} : vector<8x16xf32>, vector<16x16xf32>, vector<8x16xf32> -> vector<8x16xf32>
    %c0_17 = arith.constant 0 : index
    %c0_18 = arith.constant 0 : index
    %24 = vector.load %arg10[%c0_17, %c0_18] : memref<1x16xf32, #tpu.memory_space<vmem>>, vector<1x16xf32>
    %25 = vector.broadcast %24 : vector<1x16xf32> to vector<8x16xf32>
    %26 = arith.addf %23, %25 : vector<8x16xf32>
    %cst_19 = arith.constant 0.000000e+00 : f32
    %27 = vector.broadcast %cst_19 : f32 to vector<8x16xf32>
    %28 = arith.maximumf %26, %27 : vector<8x16xf32>
    %c0_20 = arith.constant 0 : index
    %c0_21 = arith.constant 0 : index
    %29 = vector.load %arg14[%c0_20, %c0_21] : memref<16x112xf32, #tpu.memory_space<vmem>>, vector<16x112xf32>
    %cst_22 = arith.constant dense<0.000000e+00> : vector<8x112xf32>
    %30 = tpu.matmul %28, %29, %cst_22 {dimension_numbers = #tpu.dot_dimension_numbers<[1], [0], [0], [1], [0, 0, 1, 1], [], []>} : vector<8x16xf32>, vector<16x112xf32>, vector<8x112xf32> -> vector<8x112xf32>
    %c0_23 = arith.constant 0 : index
    %c0_24 = arith.constant 0 : index
    %31 = vector.load %arg15[%c0_23, %c0_24] : memref<1x112xf32, #tpu.memory_space<vmem>>, vector<1x112xf32>
    %32 = vector.broadcast %31 : vector<1x112xf32> to vector<8x112xf32>
    %33 = arith.addf %30, %32 : vector<8x112xf32>
    %c0_25 = arith.constant 0 : index
    %c0_26 = arith.constant 0 : index
    %34 = vector.load %arg11[%c0_25, %c0_26] : memref<16x32xf32, #tpu.memory_space<vmem>>, vector<16x32xf32>
    %cst_27 = arith.constant dense<0.000000e+00> : vector<8x32xf32>
    %35 = tpu.matmul %7, %34, %cst_27 {dimension_numbers = #tpu.dot_dimension_numbers<[1], [0], [0], [1], [0, 0, 1, 1], [], []>} : vector<8x16xf32>, vector<16x32xf32>, vector<8x32xf32> -> vector<8x32xf32>
    %c0_28 = arith.constant 0 : index
    %c0_29 = arith.constant 0 : index
    %36 = vector.load %arg12[%c0_28, %c0_29] : memref<1x32xf32, #tpu.memory_space<vmem>>, vector<1x32xf32>
    %37 = vector.broadcast %36 : vector<1x32xf32> to vector<8x32xf32>
    %38 = arith.addf %35, %37 : vector<8x32xf32>
    %cst_30 = arith.constant 0.000000e+00 : f32
    %39 = vector.broadcast %cst_30 : f32 to vector<8x32xf32>
    %40 = arith.maximumf %38, %39 : vector<8x32xf32>
    %c0_31 = arith.constant 0 : index
    %c0_32 = arith.constant 0 : index
    %c0_33 = arith.constant 0 : index
    %41 = vector.load %arg13[%c0_31, %c0_32, %c0_33] : memref<3x32x32xf32, #tpu.memory_space<vmem>>, vector<1x32x32xf32>
    %42 = vector.shape_cast %41 : vector<1x32x32xf32> to vector<32x32xf32>
    %cst_34 = arith.constant dense<0.000000e+00> : vector<8x32xf32>
    %43 = tpu.matmul %40, %42, %cst_34 {dimension_numbers = #tpu.dot_dimension_numbers<[1], [0], [0], [1], [0, 0, 1, 1], [], []>} : vector<8x32xf32>, vector<32x32xf32>, vector<8x32xf32> -> vector<8x32xf32>
    %44 = vector.extract_strided_slice %33 {offsets = [0, 0], sizes = [8, 32], strides = [1, 1]} : vector<8x112xf32> to vector<8x32xf32>
    %45 = arith.addf %43, %44 : vector<8x32xf32>
    %cst_35 = arith.constant 0.000000e+00 : f32
    %46 = vector.broadcast %cst_35 : f32 to vector<8x32xf32>
    %47 = arith.maximumf %45, %46 : vector<8x32xf32>
    %c1_36 = arith.constant 1 : index
    %c0_37 = arith.constant 0 : index
    %c0_38 = arith.constant 0 : index
    %48 = vector.load %arg13[%c1_36, %c0_37, %c0_38] : memref<3x32x32xf32, #tpu.memory_space<vmem>>, vector<1x32x32xf32>
    %49 = vector.shape_cast %48 : vector<1x32x32xf32> to vector<32x32xf32>
    %cst_39 = arith.constant dense<0.000000e+00> : vector<8x32xf32>
    %50 = tpu.matmul %47, %49, %cst_39 {dimension_numbers = #tpu.dot_dimension_numbers<[1], [0], [0], [1], [0, 0, 1, 1], [], []>} : vector<8x32xf32>, vector<32x32xf32>, vector<8x32xf32> -> vector<8x32xf32>
    %51 = vector.extract_strided_slice %33 {offsets = [0, 32], sizes = [8, 32], strides = [1, 1]} : vector<8x112xf32> to vector<8x32xf32>
    %52 = arith.addf %50, %51 : vector<8x32xf32>
    %cst_40 = arith.constant 0.000000e+00 : f32
    %53 = vector.broadcast %cst_40 : f32 to vector<8x32xf32>
    %54 = arith.maximumf %52, %53 : vector<8x32xf32>
    %c2 = arith.constant 2 : index
    %c0_41 = arith.constant 0 : index
    %c0_42 = arith.constant 0 : index
    %55 = vector.load %arg13[%c2, %c0_41, %c0_42] : memref<3x32x32xf32, #tpu.memory_space<vmem>>, vector<1x32x32xf32>
    %56 = vector.shape_cast %55 : vector<1x32x32xf32> to vector<32x32xf32>
    %cst_43 = arith.constant dense<0.000000e+00> : vector<8x32xf32>
    %57 = tpu.matmul %54, %56, %cst_43 {dimension_numbers = #tpu.dot_dimension_numbers<[1], [0], [0], [1], [0, 0, 1, 1], [], []>} : vector<8x32xf32>, vector<32x32xf32>, vector<8x32xf32> -> vector<8x32xf32>
    %58 = vector.extract_strided_slice %33 {offsets = [0, 64], sizes = [8, 32], strides = [1, 1]} : vector<8x112xf32> to vector<8x32xf32>
    %59 = arith.addf %57, %58 : vector<8x32xf32>
    %cst_44 = arith.constant 0.000000e+00 : f32
    %60 = vector.broadcast %cst_44 : f32 to vector<8x32xf32>
    %61 = arith.maximumf %59, %60 : vector<8x32xf32>
    %c0_45 = arith.constant 0 : index
    %c0_46 = arith.constant 0 : index
    %62 = vector.load %arg16[%c0_45, %c0_46] : memref<32x16xf32, #tpu.memory_space<vmem>>, vector<32x16xf32>
    %cst_47 = arith.constant dense<0.000000e+00> : vector<8x16xf32>
    %63 = tpu.matmul %61, %62, %cst_47 {dimension_numbers = #tpu.dot_dimension_numbers<[1], [0], [0], [1], [0, 0, 1, 1], [], []>} : vector<8x32xf32>, vector<32x16xf32>, vector<8x16xf32> -> vector<8x16xf32>
    %64 = vector.extract_strided_slice %33 {offsets = [0, 96], sizes = [8, 16], strides = [1, 1]} : vector<8x112xf32> to vector<8x16xf32>
    %65 = arith.addf %63, %64 : vector<8x16xf32>
    %66 = vector.broadcast %2 : f32 to vector<8x16xf32>
    %67 = arith.mulf %66, %65 : vector<8x16xf32>
    %68 = arith.addf %7, %67 : vector<8x16xf32>
    %c0_48 = arith.constant 0 : index
    %c0_49 = arith.constant 0 : index
    %69 = vector.load %arg17[%c0_48, %c0_49] : memref<8x16xf32, #tpu.memory_space<vmem>>, vector<8x16xf32>
    tpu.vector_store %arg17[%c0_48, %c0_49], %68 {strides = array<i32>} : memref<8x16xf32, #tpu.memory_space<vmem>>, vector<8x16xf32>,
    return
  }
  func.func @transform_0(%arg0: i32) -> i32 {
    %c0_i32 = arith.constant 0 : i32
    %c0_i32_0 = arith.constant 0 : i32
    return %c0_i32 : i32
  }
  func.func @transform_1(%arg0: i32) -> i32 {
    %c0_i32 = arith.constant 0 : i32
    %c0_i32_0 = arith.constant 0 : i32
    return %c0_i32 : i32
  }
  func.func @transform_2(%arg0: i32) -> (i32, i32) {
    %c0_i32 = arith.constant 0 : i32
    %c0_i32_0 = arith.constant 0 : i32
    return %arg0, %c0_i32 : i32, i32
  }
  func.func @transform_3(%arg0: i32) -> (i32, i32) {
    %c0_i32 = arith.constant 0 : i32
    %c0_i32_0 = arith.constant 0 : i32
    return %arg0, %c0_i32 : i32, i32
  }
  func.func @transform_4(%arg0: i32) -> (i32, i32) {
    %c0_i32 = arith.constant 0 : i32
    %c0_i32_0 = arith.constant 0 : i32
    %c0_i32_1 = arith.constant 0 : i32
    return %c0_i32, %c0_i32_0 : i32, i32
  }
  func.func @transform_5(%arg0: i32) -> (i32, i32) {
    %c0_i32 = arith.constant 0 : i32
    %c0_i32_0 = arith.constant 0 : i32
    %c0_i32_1 = arith.constant 0 : i32
    return %c0_i32, %c0_i32_0 : i32, i32
  }
  func.func @transform_6(%arg0: i32) -> (i32, i32) {
    %c0_i32 = arith.constant 0 : i32
    %c0_i32_0 = arith.constant 0 : i32
    %c0_i32_1 = arith.constant 0 : i32
    return %c0_i32, %c0_i32_0 : i32, i32
  }
  func.func @transform_7(%arg0: i32) -> (i32, i32) {
    %c0_i32 = arith.constant 0 : i32
    %c0_i32_0 = arith.constant 0 : i32
    %c0_i32_1 = arith.constant 0 : i32
    return %c0_i32, %c0_i32_0 : i32, i32
  }
  func.func @transform_8(%arg0: i32) -> (i32, i32) {
    %c0_i32 = arith.constant 0 : i32
    %c0_i32_0 = arith.constant 0 : i32
    %c0_i32_1 = arith.constant 0 : i32
    return %c0_i32, %c0_i32_0 : i32, i32
  }
  func.func @transform_9(%arg0: i32) -> (i32, i32) {
    %c0_i32 = arith.constant 0 : i32
    %c0_i32_0 = arith.constant 0 : i32
    %c0_i32_1 = arith.constant 0 : i32
    return %c0_i32, %c0_i32_0 : i32, i32
  }
  func.func @transform_10(%arg0: i32) -> (i32, i32) {
    %c0_i32 = arith.constant 0 : i32
    %c0_i32_0 = arith.constant 0 : i32
    %c0_i32_1 = arith.constant 0 : i32
    return %c0_i32, %c0_i32_0 : i32, i32
  }
  func.func @transform_11(%arg0: i32) -> (i32, i32) {
    %c0_i32 = arith.constant 0 : i32
    %c0_i32_0 = arith.constant 0 : i32
    %c0_i32_1 = arith.constant 0 : i32
    return %c0_i32, %c0_i32_0 : i32, i32
  }
  func.func @transform_12(%arg0: i32) -> (i32, i32, i32) {
    %c0_i32 = arith.constant 0 : i32
    %c0_i32_0 = arith.constant 0 : i32
    %c0_i32_1 = arith.constant 0 : i32
    %c0_i32_2 = arith.constant 0 : i32
    return %c0_i32, %c0_i32_0, %c0_i32_1 : i32, i32, i32
  }
  func.func @transform_13(%arg0: i32) -> (i32, i32) {
    %c0_i32 = arith.constant 0 : i32
    %c0_i32_0 = arith.constant 0 : i32
    %c0_i32_1 = arith.constant 0 : i32
    return %c0_i32, %c0_i32_0 : i32, i32
  }
  func.func @transform_14(%arg0: i32) -> (i32, i32) {
    %c0_i32 = arith.constant 0 : i32
    %c0_i32_0 = arith.constant 0 : i32
    %c0_i32_1 = arith.constant 0 : i32
    return %c0_i32, %c0_i32_0 : i32, i32
  }
  func.func @transform_15(%arg0: i32) -> (i32, i32) {
    %c0_i32 = arith.constant 0 : i32
    %c0_i32_0 = arith.constant 0 : i32
    %c0_i32_1 = arith.constant 0 : i32
    return %c0_i32, %c0_i32_0 : i32, i32
  }
  func.func @transform_16(%arg0: i32) -> (i32, i32) {
    %c0_i32 = arith.constant 0 : i32
    %c0_i32_0 = arith.constant 0 : i32
    return %arg0, %c0_i32 : i32, i32
  }
}

</mosaic_0001>

<llo_original>
// kernel: attenuation_processor.1
$region0: #{attenuation_processor.1}
  #allocation0 [shape = 'u32[]', space=smem, size = 0x4, offset = 0x4, fixed_abs, tag = 'smem constant byte address 0x4 - core index']
  #allocation1 [shape = 'u32[72,128]{1,0:T(1,128)}', space=vmem, size = 0x9000, scoped, tag = 'internal scratch']
  #allocation2 [shape = 'f32[1]{0:T(128)S(6)}', space=smem, size = 0x200, scoped, tag = 'scoped memory for attenuation_processor.1']
  %s0 = inlined_call_operand.vmem [shape: f32[2], index: 0, kind: input, shape index: {}]
  %s1 = inlined_call_operand.<no memory space> [shape: f32[1], index: 1, kind: input, shape index: {}]
  %s2 = inlined_call_operand.vmem [shape: f32[8,16], index: 2, kind: input, shape index: {}]
  %s3 = inlined_call_operand.vmem [shape: f32[8,2], index: 3, kind: input, shape index: {}]
  %s4 = inlined_call_operand.vmem [shape: f32[1,2], index: 4, kind: input, shape index: {}]
  %s5 = inlined_call_operand.vmem [shape: f32[1,2], index: 5, kind: input, shape index: {}]
  %s6 = inlined_call_operand.vmem [shape: f32[2,16], index: 6, kind: input, shape index: {}]
  %s7 = inlined_call_operand.vmem [shape: f32[1,16], index: 7, kind: input, shape index: {}]
  %s8 = inlined_call_operand.vmem [shape: f32[16,16], index: 8, kind: input, shape index: {}]
  %s9 = inlined_call_operand.vmem [shape: f32[1,16], index: 9, kind: input, shape index: {}]
  %s10 = inlined_call_operand.vmem [shape: f32[16,32], index: 10, kind: input, shape index: {}]
  %s11 = inlined_call_operand.vmem [shape: f32[1,32], index: 11, kind: input, shape index: {}]
  %s12 = inlined_call_operand.vmem [shape: f32[3,32,32], index: 12, kind: input, shape index: {}]
  %s13 = inlined_call_operand.vmem [shape: f32[16,112], index: 13, kind: input, shape index: {}]
  %s14 = inlined_call_operand.vmem [shape: f32[1,112], index: 14, kind: input, shape index: {}]
  %s15 = inlined_call_operand.vmem [shape: f32[32,16], index: 15, kind: input, shape index: {}]
  %s16 = inlined_call_operand.vmem [shape: f32[8,16], index: 16, kind: output, shape index: {}]
  %s17 = sld [smem:[#allocation0]]
  $region78: #{attenuation_processor.1} parent=0
    _
  %s19 = ssub.s32 1, %s17
  %s20 = scalar_select 0, %s19, %s17
  %21 = sst [smem:[#allocation2]] %s1
  $region1: #{attenuation_processor.1} parent=0
    #allocation3 [shape = 'u8[512]{0}', space=smem, size = 0x200, scoped, tag = 'input window, operand 0, single buffered']
    #allocation4 [shape = 's32[1]{0}', space=sflag, size = 0x4, scoped, tag = 'scoped memory for attenuation_processor.1']
    %22 = vsyncpa [#allocation4], 0
    // Predicated region
    $region2: #{attenuation_processor.1} parent=1 // pred_check
      _
    $region3: #{attenuation_processor.1} parent=1 // pred_check_branch
      %24 = sbr.rel (0) target = $region5
    $region4: #{attenuation_processor.1} parent=1 // pred_region
      %26 = vsyncadd [#allocation4], 0
      %s28 = sshll.u32 %s0, 4
      %s29 = int_to_ptr.vmem [resolvable:$true] %s28
      %31 = dma.vmem_to_smem %s29, 16, [#allocation3], [#allocation4]
    $region5: #{attenuation_processor.1} parent=1 // pred_fallthru
      _
    // Predicated region
    $region6: #{attenuation_processor.1} parent=1 // pred_check
      _
    $region7: #{attenuation_processor.1} parent=1 // pred_check_branch
      %33 = sbr.rel (0) target = $region9
    $region8: #{attenuation_processor.1} parent=1 // pred_region
      _
    $region9: #{attenuation_processor.1} parent=1 // pred_fallthru
      _
    // Predicated region
    $region10: #{attenuation_processor.1} parent=1 // pred_check
      _
    $region11: #{attenuation_processor.1} parent=1 // pred_check_branch
      %35 = sbr.rel (0) target = $region13
    $region12: #{attenuation_processor.1} parent=1 // pred_region
      _
    $region13: #{attenuation_processor.1} parent=1 // pred_fallthru
      _
    // Predicated region
    $region14: #{attenuation_processor.1} parent=1 // pred_check
      _
    $region15: #{attenuation_processor.1} parent=1 // pred_check_branch
      %37 = sbr.rel (0) target = $region17
    $region16: #{attenuation_processor.1} parent=1 // pred_region
      _
    $region17: #{attenuation_processor.1} parent=1 // pred_fallthru
      _
    // Predicated region
    $region18: #{attenuation_processor.1} parent=1 // pred_check
      _
    $region19: #{attenuation_processor.1} parent=1 // pred_check_branch
      %39 = sbr.rel (0) target = $region21
    $region20: #{attenuation_processor.1} parent=1 // pred_region
      _
    $region21: #{attenuation_processor.1} parent=1 // pred_fallthru
      _
    // Predicated region
    $region22: #{attenuation_processor.1} parent=1 // pred_check
      _
    $region23: #{attenuation_processor.1} parent=1 // pred_check_branch
      %41 = sbr.rel (0) target = $region25
    $region24: #{attenuation_processor.1} parent=1 // pred_region
      _
    $region25: #{attenuation_processor.1} parent=1 // pred_fallthru
      _
    // Predicated region
    $region26: #{attenuation_processor.1} parent=1 // pred_check
      _
    $region27: #{attenuation_processor.1} parent=1 // pred_check_branch
      %43 = sbr.rel (0) target = $region29
    $region28: #{attenuation_processor.1} parent=1 // pred_region
      _
    $region29: #{attenuation_processor.1} parent=1 // pred_fallthru
      _
    // Predicated region
    $region30: #{attenuation_processor.1} parent=1 // pred_check
      _
    $region31: #{attenuation_processor.1} parent=1 // pred_check_branch
      %45 = sbr.rel (0) target = $region33
    $region32: #{attenuation_processor.1} parent=1 // pred_region
      _
    $region33: #{attenuation_processor.1} parent=1 // pred_fallthru
      _
    // Predicated region
    $region34: #{attenuation_processor.1} parent=1 // pred_check
      _
    $region35: #{attenuation_processor.1} parent=1 // pred_check_branch
      %47 = sbr.rel (0) target = $region37
    $region36: #{attenuation_processor.1} parent=1 // pred_region
      _
    $region37: #{attenuation_processor.1} parent=1 // pred_fallthru
      _
    // Predicated region
    $region38: #{attenuation_processor.1} parent=1 // pred_check
      _
    $region39: #{attenuation_processor.1} parent=1 // pred_check_branch
      %49 = sbr.rel (0) target = $region41
    $region40: #{attenuation_processor.1} parent=1 // pred_region
      _
    $region41: #{attenuation_processor.1} parent=1 // pred_fallthru
      _
    // Predicated region
    $region42: #{attenuation_processor.1} parent=1 // pred_check
      _
    $region43: #{attenuation_processor.1} parent=1 // pred_check_branch
      %51 = sbr.rel (0) target = $region45
    $region44: #{attenuation_processor.1} parent=1 // pred_region
      _
    $region45: #{attenuation_processor.1} parent=1 // pred_fallthru
      _
    // Predicated region
    $region46: #{attenuation_processor.1} parent=1 // pred_check
      _
    $region47: #{attenuation_processor.1} parent=1 // pred_check_branch
      %53 = sbr.rel (0) target = $region49
    $region48: #{attenuation_processor.1} parent=1 // pred_region
      _
    $region49: #{attenuation_processor.1} parent=1 // pred_fallthru
      _
    // Predicated region
    $region50: #{attenuation_processor.1} parent=1 // pred_check
      _
    $region51: #{attenuation_processor.1} parent=1 // pred_check_branch
      %55 = sbr.rel (0) target = $region53
    $region52: #{attenuation_processor.1} parent=1 // pred_region
      _
    $region53: #{attenuation_processor.1} parent=1 // pred_fallthru
      _
    // Predicated region
    $region54: #{attenuation_processor.1} parent=1 // pred_check
      _
    $region55: #{attenuation_processor.1} parent=1 // pred_check_branch
      %57 = sbr.rel (0) target = $region57
    $region56: #{attenuation_processor.1} parent=1 // pred_region
      _
    $region57: #{attenuation_processor.1} parent=1 // pred_fallthru
      _
    // Predicated region
    $region58: #{attenuation_processor.1} parent=1 // pred_check
      _
    $region59: #{attenuation_processor.1} parent=1 // pred_check_branch
      %59 = sbr.rel (0) target = $region61
    $region60: #{attenuation_processor.1} parent=1 // pred_region
      _
    $region61: #{attenuation_processor.1} parent=1 // pred_fallthru
      _
    // Predicated region
    $region62: #{attenuation_processor.1} parent=1 // pred_check
      _
    $region63: #{attenuation_processor.1} parent=1 // pred_check_branch
      %61 = sbr.rel (0) target = $region65
    $region64: #{attenuation_processor.1} parent=1 // pred_region
      _
    $region65: #{attenuation_processor.1} parent=1 // pred_fallthru
      _
    // Predicated region
    $region66: #{attenuation_processor.1} parent=1 // pred_check
      _
    $region67: #{attenuation_processor.1} parent=1 // pred_check_branch
      %63 = sbr.rel (0) target = $region69
    $region68: #{attenuation_processor.1} parent=1 // pred_region
      %65 = dma.done [#allocation4], 16
    $region69: #{attenuation_processor.1} parent=1 // pred_fallthru
      _
    %66 = sfence
    %s67 = sld [smem:[#allocation3]]
    %s68 = sld [smem:[#allocation3 + $0x1]]
    %s69 = sld [smem:[#allocation2]]
    %v70 = vld [vmem:[%s2] sm:$0xff]
    %v71 = vstv %s67
    %v72 = vsub.f32 %v70, %v71
    %v73 = vstv %s68
    %v74 = vmul.f32 %v72, %v73
    %v75 = vld [vmem:[%s3] sm:$0xff]
    %v76 = vld [vmem:[%s4] sm:$0x1]
    %v78 = vperm.slane %v76, 0
    %v80 = vsub.f32 %v75, %v78
    %v81 = vld [vmem:[%s5] sm:$0x1]
    %v83 = vperm.slane %v81, 0
    %v85 = vmul.f32 %v80, %v83
    %v86 = vld [vmem:[%s6] sm:$0x3]
    %v87 = vld [vmem:[%s7] sm:$0x1]
    %v89 = vperm.slane %v87, 0
    %vm91 = vcmask 15360
    %v93 = vsel %vm91, %v85, 0
    %vm95 = vcmask 1041408
    %v97 = vsel %vm95, %v86, 0
    %99 = vmatpush.msra.mxu0 0.0
    %100 = vmatpush.msra.mxu0 0.0
    %101 = vmatpush.msra.mxu0 0.0
    %102 = vmatpush.msra.mxu0 0.0
    %103 = vmatpush.msra.mxu0 0.0
    %104 = vmatpush.msra.mxu0 0.0
    %105 = vmatpush.msra.mxu0 0.0
    %106 = vmatpush.msra.mxu0 0.0
    %107 = vmatpush.msra.mxu0 0.0
    %108 = vmatpush.msra.mxu0 0.0
    %109 = vmatpush.msra.mxu0 0.0
    %110 = vmatpush.msra.mxu0 0.0
    %111 = vmatpush.msra.mxu0 0.0
    %112 = vmatpush.msra.mxu0 0.0
    %113 = vmatpush.msra.mxu0 0.0
    %114 = vmatpush.msra.mxu0 %v97
    %115 = vmatmul.f32.gmra.mxu0 %v93
    %v116 = vpop.f32.mrf.mxu0
    %v117 = vadd.f32 %v89, %v116
    %118 = vdwg.mxu0
    %v119 = vmax.f32 %v117, 0.0
    %v120 = vld [vmem:[%s8] sm:$0xff]
    %v121 = vld [vmem:[%s8 + $0x8] sm:$0xff]
    %v122 = vld [vmem:[%s9] sm:$0x1]
    %v124 = vperm.slane %v122, 0
    %vm126 = vcmask 130048
    %v128 = vsel %vm126, %v119, 0
    %130 = vmatpush.msra.mxu0 0.0
    %131 = vmatpush.msra.mxu0 0.0
    %132 = vmatpush.msra.mxu0 0.0
    %133 = vmatpush.msra.mxu0 0.0
    %134 = vmatpush.msra.mxu0 0.0
    %135 = vmatpush.msra.mxu0 0.0
    %136 = vmatpush.msra.mxu0 0.0
    %137 = vmatpush.msra.mxu0 0.0
    %138 = vmatpush.msra.mxu0 0.0
    %139 = vmatpush.msra.mxu0 0.0
    %140 = vmatpush.msra.mxu0 0.0
    %141 = vmatpush.msra.mxu0 0.0
    %142 = vmatpush.msra.mxu0 0.0
    %143 = vmatpush.msra.mxu0 0.0
    %144 = vmatpush.msra.mxu0 %v121
    %145 = vmatpush.msra.mxu0 %v120
    %146 = vmatmul.f32.gmra.mxu0 %v128
    %v147 = vpop.f32.mrf.mxu0
    %v148 = vadd.f32 %v124, %v147
    %149 = vdwg.mxu0
    %v150 = vmax.f32 %v148, 0.0
    %v151 = vld [vmem:[%s13] sm:$0xff]
    %v152 = vld [vmem:[%s13 + $0x8] sm:$0xff]
    %v153 = vld [vmem:[%s14] sm:$0x1]
    %v155 = vperm.slane %v153, 0
    %v158 = vsel %vm126, %v150, 0
    %160 = vmatpush.msra.mxu0 0.0
    %161 = vmatpush.msra.mxu0 0.0
    %162 = vmatpush.msra.mxu0 0.0
    %163 = vmatpush.msra.mxu0 0.0
    %164 = vmatpush.msra.mxu0 0.0
    %165 = vmatpush.msra.mxu0 0.0
    %166 = vmatpush.msra.mxu0 0.0
    %167 = vmatpush.msra.mxu0 0.0
    %168 = vmatpush.msra.mxu0 0.0
    %169 = vmatpush.msra.mxu0 0.0
    %170 = vmatpush.msra.mxu0 0.0
    %171 = vmatpush.msra.mxu0 0.0
    %172 = vmatpush.msra.mxu0 0.0
    %173 = vmatpush.msra.mxu0 0.0
    %174 = vmatpush.msra.mxu0 %v152
    %175 = vmatpush.msra.mxu0 %v151
    %176 = vmatmul.f32.gmra.mxu0 %v158
    %v177 = vpop.f32.mrf.mxu0
    %v178 = vadd.f32 %v155, %v177
    %179 = vdwg.mxu0
    %v180 = vld [vmem:[%s10] sm:$0xff]
    %v181 = vld [vmem:[%s10 + $0x8] sm:$0xff]
    %v182 = vld [vmem:[%s11] sm:$0x1]
    %v184 = vperm.slane %v182, 0
    %v187 = vsel %vm126, %v74, 0
    %189 = vmatpush.msra.mxu0 0.0
    %190 = vmatpush.msra.mxu0 0.0
    %191 = vmatpush.msra.mxu0 0.0
    %192 = vmatpush.msra.mxu0 0.0
    %193 = vmatpush.msra.mxu0 0.0
    %194 = vmatpush.msra.mxu0 0.0
    %195 = vmatpush.msra.mxu0 0.0
    %196 = vmatpush.msra.mxu0 0.0
    %197 = vmatpush.msra.mxu0 0.0
    %198 = vmatpush.msra.mxu0 0.0
    %199 = vmatpush.msra.mxu0 0.0
    %200 = vmatpush.msra.mxu0 0.0
    %201 = vmatpush.msra.mxu0 0.0
    %202 = vmatpush.msra.mxu0 0.0
    %203 = vmatpush.msra.mxu0 %v181
    %204 = vmatpush.msra.mxu0 %v180
    %205 = vmatmul.f32.gmra.mxu0 %v187
    %v206 = vpop.f32.mrf.mxu0
    %v207 = vadd.f32 %v184, %v206
    %208 = vdwg.mxu0
    %v209 = vmax.f32 %v207, 0.0
    %v210 = vld [vmem:[%s12] sm:$0xff]
    %v211 = vld [vmem:[%s12 + $0x8] sm:$0xff]
    %v212 = vld [vmem:[%s12 + $0x10] sm:$0xff]
    %v213 = vld [vmem:[%s12 + $0x18] sm:$0xff]
    %vm214 = vcmask 261120
    %v216 = vsel %vm214, %v209, 0
    %218 = vmatpush.msra.mxu0 0.0
    %219 = vmatpush.msra.mxu0 0.0
    %220 = vmatpush.msra.mxu0 0.0
    %221 = vmatpush.msra.mxu0 0.0
    %222 = vmatpush.msra.mxu0 0.0
    %223 = vmatpush.msra.mxu0 0.0
    %224 = vmatpush.msra.mxu0 0.0
    %225 = vmatpush.msra.mxu0 0.0
    %226 = vmatpush.msra.mxu0 0.0
    %227 = vmatpush.msra.mxu0 0.0
    %228 = vmatpush.msra.mxu0 0.0
    %229 = vmatpush.msra.mxu0 0.0
    %230 = vmatpush.msra.mxu0 %v213
    %231 = vmatpush.msra.mxu0 %v212
    %232 = vmatpush.msra.mxu0 %v211
    %233 = vmatpush.msra.mxu0 %v210
    %234 = vmatmul.f32.gmra.mxu0 %v216
    %v235 = vpop.f32.mrf.mxu0
    %v236 = vadd.f32 %v178, %v235
    %237 = vdwg.mxu0
    %v238 = vmax.f32 %v236, 0.0
    %s239 = scalar_lea.vmem %s12, 32
    %v240 = vld [vmem:[%s239] sm:$0xff]
    %v241 = vld [vmem:[%s239 + $0x8] sm:$0xff]
    %v242 = vld [vmem:[%s239 + $0x10] sm:$0xff]
    %v243 = vld [vmem:[%s239 + $0x18] sm:$0xff]
    %245 = vrot.lane.b32.xlu0 %v178, 96
    %v246 = vpop.permute.xlu0 %245
    %v249 = vsel %vm214, %v238, 0
    %251 = vmatpush.msra.mxu0 0.0
    %252 = vmatpush.msra.mxu0 0.0
    %253 = vmatpush.msra.mxu0 0.0
    %254 = vmatpush.msra.mxu0 0.0
    %255 = vmatpush.msra.mxu0 0.0
    %256 = vmatpush.msra.mxu0 0.0
    %257 = vmatpush.msra.mxu0 0.0
    %258 = vmatpush.msra.mxu0 0.0
    %259 = vmatpush.msra.mxu0 0.0
    %260 = vmatpush.msra.mxu0 0.0
    %261 = vmatpush.msra.mxu0 0.0
    %262 = vmatpush.msra.mxu0 0.0
    %263 = vmatpush.msra.mxu0 %v243
    %264 = vmatpush.msra.mxu0 %v242
    %265 = vmatpush.msra.mxu0 %v241
    %266 = vmatpush.msra.mxu0 %v240
    %267 = vmatmul.f32.gmra.mxu0 %v249
    %v268 = vpop.f32.mrf.mxu0
    %v269 = vadd.f32 %v246, %v268
    %270 = vdwg.mxu0
    %v271 = vmax.f32 %v269, 0.0
    %s272 = scalar_lea.vmem %s12, 64
    %v273 = vld [vmem:[%s272] sm:$0xff]
    %v274 = vld [vmem:[%s272 + $0x8] sm:$0xff]
    %v275 = vld [vmem:[%s272 + $0x10] sm:$0xff]
    %v276 = vld [vmem:[%s272 + $0x18] sm:$0xff]
    %277 = vrot.lane.b32.xlu0 %v178, 64
    %v278 = vpop.permute.xlu0 %277
    %v281 = vsel %vm214, %v271, 0
    %283 = vmatpush.msra.mxu0 0.0
    %284 = vmatpush.msra.mxu0 0.0
    %285 = vmatpush.msra.mxu0 0.0
    %286 = vmatpush.msra.mxu0 0.0
    %287 = vmatpush.msra.mxu0 0.0
    %288 = vmatpush.msra.mxu0 0.0
    %289 = vmatpush.msra.mxu0 0.0
    %290 = vmatpush.msra.mxu0 0.0
    %291 = vmatpush.msra.mxu0 0.0
    %292 = vmatpush.msra.mxu0 0.0
    %293 = vmatpush.msra.mxu0 0.0
    %294 = vmatpush.msra.mxu0 0.0
    %295 = vmatpush.msra.mxu0 %v276
    %296 = vmatpush.msra.mxu0 %v275
    %297 = vmatpush.msra.mxu0 %v274
    %298 = vmatpush.msra.mxu0 %v273
    %299 = vmatmul.f32.gmra.mxu0 %v281
    %v300 = vpop.f32.mrf.mxu0
    %v301 = vadd.f32 %v278, %v300
    %302 = vdwg.mxu0
    %v303 = vmax.f32 %v301, 0.0
    %v304 = vld [vmem:[%s15] sm:$0xff]
    %v305 = vld [vmem:[%s15 + $0x8] sm:$0xff]
    %v306 = vld [vmem:[%s15 + $0x10] sm:$0xff]
    %v307 = vld [vmem:[%s15 + $0x18] sm:$0xff]
    %308 = vrot.lane.b32.xlu0 %v178, 32
    %v309 = vpop.permute.xlu0 %308
    %v312 = vsel %vm214, %v303, 0
    %314 = vmatpush.msra.mxu0 0.0
    %315 = vmatpush.msra.mxu0 0.0
    %316 = vmatpush.msra.mxu0 0.0
    %317 = vmatpush.msra.mxu0 0.0
    %318 = vmatpush.msra.mxu0 0.0
    %319 = vmatpush.msra.mxu0 0.0
    %320 = vmatpush.msra.mxu0 0.0
    %321 = vmatpush.msra.mxu0 0.0
    %322 = vmatpush.msra.mxu0 0.0
    %323 = vmatpush.msra.mxu0 0.0
    %324 = vmatpush.msra.mxu0 0.0
    %325 = vmatpush.msra.mxu0 0.0
    %326 = vmatpush.msra.mxu0 %v307
    %327 = vmatpush.msra.mxu0 %v306
    %328 = vmatpush.msra.mxu0 %v305
    %329 = vmatpush.msra.mxu0 %v304
    %330 = vmatmul.f32.gmra.mxu0 %v312
    %v331 = vpop.f32.mrf.mxu0
    %v332 = vadd.f32 %v309, %v331
    %333 = vdwg.mxu0
    %v334 = vstv %s69
    %v335 = vmul.f32 %v334, %v332
    %v336 = vadd.f32 %v74, %v335
    %337 = vst.msk [vmem:[%s16] sm:$0xff] %vm126, %v336
    // Predicated region
    $region70: #{attenuation_processor.1} parent=1 // pred_check
      _
    $region71: #{attenuation_processor.1} parent=1 // pred_check_branch
      %339 = sbr.rel (0) target = $region73
    $region72: #{attenuation_processor.1} parent=1 // pred_region
      _
    $region73: #{attenuation_processor.1} parent=1 // pred_fallthru
      _
    // Predicated region
    $region74: #{attenuation_processor.1} parent=1 // pred_check
      _
    $region75: #{attenuation_processor.1} parent=1 // pred_check_branch
      %341 = sbr.rel (0) target = $region77
    $region76: #{attenuation_processor.1} parent=1 // pred_region
      _
    $region77: #{attenuation_processor.1} parent=1 // pred_fallthru
      _
    %342 = vsyncpa [#allocation4], 1

</llo_original>
